<compile_context>
chip_gen: v6e
topology: v6e:2x2x1
jax: 0.10.0
libtpu: 0.0.40
codegen_flags: <defaults>
</compile_context>

<pallas_src>
import math
import functools

import jax
import jax.numpy as jnp
from jax import lax
from jax.experimental import pallas as pl
from jax.experimental.pallas import tpu as pltpu


def _round_up(x, m):
    return (x + m - 1) // m * m


def _pick_batch_tile(b, nq, target_m=256):
    """Largest divisor of b such that bt*nq roughly fills the MXU M dim."""
    bt = max(1, min(b, max(1, target_m // max(nq, 1))))
    while b % bt:
        bt -= 1
    return bt


def _attention_qkv_kernel(q_ref, k_ref, v_ref, wq_ref, wk_ref, wv_ref,
                          wo_ref, bo_ref, o_ref, *, heads, dh_pad):
    """One grid step = Bt batch elements, all heads fused.

    q_ref        : (Bt, Nq, Dp)        bf16
    k_ref, v_ref : (Bt, Nk, Dp)        bf16
    wq/wk/wv_ref : (Dp, H*DHp)         bf16  (softmax scale folded into Wq,
                                              per-head blocks 128-lane aligned)
    wo_ref       : (H*DHp, Dp)         bf16
    bo_ref       : (1, Dp)             f32
    o_ref        : (Bt, Nq, Dp)        f32
    """
    bt, nq, dim_p = q_ref.shape
    _, nk, _ = k_ref.shape
    inner_p = heads * dh_pad

    # Fold batch into the matmul M dimension (layout-preserving reshape:
    # last dim unchanged, second-minor dims are multiples of 8).
    q2 = q_ref[...].reshape(bt * nq, dim_p)
    k2 = k_ref[...].reshape(bt * nk, dim_p)
    v2 = v_ref[...].reshape(bt * nk, dim_p)

    # Fused head projections: one wide-N MXU matmul each, single bf16 cast.
    qh = jnp.dot(q2, wq_ref[...], preferred_element_type=jnp.float32
                 ).astype(jnp.bfloat16)                       # (Bt*Nq, H*DHp)
    kh = jnp.dot(k2, wk_ref[...], preferred_element_type=jnp.float32
                 ).astype(jnp.bfloat16)                       # (Bt*Nk, H*DHp)
    vh = jnp.dot(v2, wv_ref[...], preferred_element_type=jnp.float32
                 ).astype(jnp.bfloat16)                       # (Bt*Nk, H*DHp)

    qh = qh.reshape(bt, nq, inner_p)
    kh = kh.reshape(bt, nk, inner_p)
    vh = vh.reshape(bt, nk, inner_p)

    # Accumulate the output projection per head (no concatenate, all slices
    # fall on 128-lane / 128-sublane tile boundaries since dh_pad % 128 == 0).
    acc = jnp.zeros((bt * nq, dim_p), jnp.float32)
    for h in range(heads):                         # static; unrolled at trace
        lo = h * dh_pad
        qh_h = qh[:, :, lo:lo + dh_pad]            # (Bt, Nq, DHp) lane-aligned
        kh_h = kh[:, :, lo:lo + dh_pad]            # (Bt, Nk, DHp)
        vh_h = vh[:, :, lo:lo + dh_pad]            # (Bt, Nk, DHp)

        # Scores batched over the batch-tile dim; contract last dims directly.
        s = lax.dot_general(qh_h, kh_h, (((2,), (2,)), ((0,), (0,))),
                            preferred_element_type=jnp.float32)  # (Bt, Nq, Nk)

        # Numerically-stable softmax in f32; approx reciprocal on the EUP.
        s = s - jnp.max(s, axis=-1, keepdims=True)
        p = jnp.exp(s)
        attn = (p * pl.reciprocal(jnp.sum(p, axis=-1, keepdims=True),
                                  approx=True)).astype(jnp.bfloat16)

        out_h = lax.dot_general(attn, vh_h, (((2,), (1,)), ((0,), (0,))),
                                preferred_element_type=jnp.float32)  # (Bt,Nq,DHp)
        out_h = out_h.reshape(bt * nq, dh_pad).astype(jnp.bfloat16)

        # Sublane slice of Wo at a 128 multiple: cheap, no relayout.
        acc = acc + jnp.dot(out_h, wo_ref[lo:lo + dh_pad, :],
                            preferred_element_type=jnp.float32)      # (Bt*Nq, Dp)

    o_ref[...] = (acc + bo_ref[...]).reshape(bt, nq, dim_p).astype(o_ref.dtype)


def prepare_attention_qkv_params(wq, wk, wv, wo, bo, *, heads, dim_head):
    """One-time weight prep (call once, reuse across forward calls):

      - fold the 1/sqrt(dim_head) softmax scale into Wq
      - pad dim_head -> dh_pad (multiple of 128) with zeros per head, so all
        in-kernel head slices are lane-tile aligned (zeros contribute nothing)
      - pad dim -> dim_pad (multiple of 128) so the output store is lane-dense
      - cast all matmul operands to bf16; keep the bias in f32
    """
    dim = wq.shape[0]
    assert wq.shape == (dim, heads * dim_head)
    dh_pad = _round_up(dim_head, 128)
    dim_pad = _round_up(dim, 128)
    scale = dim_head ** (-0.5)

    def pad_in_proj(w, s=1.0):
        # (dim, heads*dim_head) -> (dim_pad, heads*dh_pad), per-head aligned.
        w3 = (w * s).reshape(dim, heads, dim_head)
        wp = jnp.zeros((dim_pad, heads, dh_pad), w.dtype)
        wp = wp.at[:dim, :, :dim_head].set(w3)
        return wp.reshape(dim_pad, heads * dh_pad).astype(jnp.bfloat16)

    wq_p = pad_in_proj(wq, scale)
    wk_p = pad_in_proj(wk)
    wv_p = pad_in_proj(wv)

    wo3 = wo.reshape(heads, dim_head, dim)
    wo_p = jnp.zeros((heads, dh_pad, dim_pad), wo.dtype)
    wo_p = wo_p.at[:, :dim_head, :dim].set(wo3)
    wo_p = wo_p.reshape(heads * dh_pad, dim_pad).astype(jnp.bfloat16)

    bo_p = jnp.zeros((1, dim_pad), jnp.float32).at[0, :dim].set(
        bo.astype(jnp.float32))

    return dict(wq=wq_p, wk=wk_p, wv=wv_p, wo=wo_p, bo=bo_p,
                heads=heads, dim_head=dim_head, dh_pad=dh_pad,
                dim=dim, dim_pad=dim_pad)


def attention_qkv(q, k, v, params):
    """Pallas implementation of Attention_qkv.forward (dropout p=0 => no-op)."""
    b, nq, dim = q.shape
    bk, nk, _ = k.shape
    assert bk == b, "einsum in the reference requires k/v batch == q batch"
    assert dim == params["dim"]

    heads = params["heads"]
    dh_pad = params["dh_pad"]
    dim_pad = params["dim_pad"]
    inner_p = heads * dh_pad

    def pad_act(x):
        xb = x.astype(jnp.bfloat16)
        if dim_pad != dim:
            xb = jnp.pad(xb, ((0, 0), (0, 0), (0, dim_pad - dim)))
        return xb

    qp, kp, vp = pad_act(q), pad_act(k), pad_act(v)

    bt = _pick_batch_tile(b, nq)          # Bt*Nq aims at >=256 rows (MXU M fill)
    grid = (b // bt,)

    kernel = functools.partial(_attention_qkv_kernel, heads=heads, dh_pad=dh_pad)

    out_p = pl.pallas_call(
        kernel,
        out_shape=jax.ShapeDtypeStruct((b, nq, dim_pad), q.dtype),
        grid_spec=pltpu.PrefetchScalarGridSpec(
            num_scalar_prefetch=0,
            grid=grid,
            in_specs=[
                pl.BlockSpec((bt, nq, dim_pad), lambda i: (i, 0, 0)),   # q
                pl.BlockSpec((bt, nk, dim_pad), lambda i: (i, 0, 0)),   # k
                pl.BlockSpec((bt, nk, dim_pad), lambda i: (i, 0, 0)),   # v
                # Batch-invariant weights: constant block index => DMA'd once.
                pl.BlockSpec((dim_pad, inner_p), lambda i: (0, 0)),     # Wq (pre-scaled)
                pl.BlockSpec((dim_pad, inner_p), lambda i: (0, 0)),     # Wk
                pl.BlockSpec((dim_pad, inner_p), lambda i: (0, 0)),     # Wv
                pl.BlockSpec((inner_p, dim_pad), lambda i: (0, 0)),     # Wo
                pl.BlockSpec((1, dim_pad), lambda i: (0, 0)),           # bias
            ],
            out_specs=pl.BlockSpec((bt, nq, dim_pad), lambda i: (i, 0, 0)),
        ),
        compiler_params=pltpu.CompilerParams(
            dimension_semantics=("parallel",),
            vmem_limit_bytes=32 * 1024 * 1024),
    )(qp, kp, vp, params["wq"], params["wk"], params["wv"],
      params["wo"], params["bo"])

    if dim_pad != dim:
        out_p = out_p[..., :dim]
    return out_p


def attention_qkv_reference(q, k, v, wq, wk, wv, wo, bo, *, heads, dim_head):
    """Pure-JAX f32 reference reproducing the PyTorch forward."""
    b, n, dim = q.shape
    scale = dim_head ** (-0.5)

    def split(x):
        return x.reshape(b, -1, heads, dim_head).transpose(0, 2, 1, 3)

    qh = split(q @ wq)
    kh = split(k @ wk)
    vh = split(v @ wv)
    dots = jnp.einsum('bhid,bhjd->bhij', qh, kh) * scale
    attn = jax.nn.softmax(dots, axis=-1)
    out = jnp.einsum('bhij,bhjd->bhid', attn, vh)
    out = out.transpose(0, 2, 1, 3).reshape(b, n, heads * dim_head)
    return out @ wo + bo


if __name__ == "__main__":
    # Small shapes consistent with the module's forward.
    B, NQ, NK, DIM = 2, 8, 8, 16
    HEADS, DIM_HEAD = 2, 32
    INNER = HEADS * DIM_HEAD

    key = jax.random.PRNGKey(0)
    kq, kk, kv, kwq, kwk, kwv, kwo, kbo = jax.random.split(key, 8)

    q = jax.random.normal(kq, (B, NQ, DIM), jnp.float32)
    k = jax.random.normal(kk, (B, NK, DIM), jnp.float32)
    v = jax.random.normal(kv, (B, NK, DIM), jnp.float32)

    # Deterministic synthetic weights (Linear(dim, inner) etc., bias only on to_out).
    s_in = 1.0 / math.sqrt(DIM)
    s_out = 1.0 / math.sqrt(INNER)
    wq = jax.random.uniform(kwq, (DIM, INNER), jnp.float32, -s_in, s_in)
    wk = jax.random.uniform(kwk, (DIM, INNER), jnp.float32, -s_in, s_in)
    wv = jax.random.uniform(kwv, (DIM, INNER), jnp.float32, -s_in, s_in)
    wo = jax.random.uniform(kwo, (INNER, DIM), jnp.float32, -s_out, s_out)
    bo = jax.random.uniform(kbo, (DIM,), jnp.float32, -s_out, s_out)

    # One-time weight prep (hoisted out of the per-call hot path).
    params = prepare_attention_qkv_params(wq, wk, wv, wo, bo,
                                          heads=HEADS, dim_head=DIM_HEAD)

    out = attention_qkv(q, k, v, params)
    out = jax.block_until_ready(out)

    ref = attention_qkv_reference(q, k, v, wq, wk, wv, wo, bo,
                                  heads=HEADS, dim_head=DIM_HEAD)
    assert out.shape == (B, NQ, DIM)
    # bf16 matmul operands + approx reciprocal => relaxed tolerance vs f32 ref.
    max_err = jnp.max(jnp.abs(out - ref))
    assert jnp.allclose(out, ref, atol=5e-2, rtol=5e-2), \
        f"max abs err = {max_err}"

    print("KERNEL_OK")
</pallas_src>

<mosaic_0001>
module attributes {stable_mosaic.version = 11 : i64} {
  func.func @_attention_qkv_kernel(%arg0: i32, %arg1: memref<2x8x128xbf16, #tpu.memory_space<vmem>>, %arg2: memref<2x8x128xbf16, #tpu.memory_space<vmem>>, %arg3: memref<2x8x128xbf16, #tpu.memory_space<vmem>>, %arg4: memref<128x256xbf16, #tpu.memory_space<vmem>>, %arg5: memref<128x256xbf16, #tpu.memory_space<vmem>>, %arg6: memref<128x256xbf16, #tpu.memory_space<vmem>>, %arg7: memref<256x128xbf16, #tpu.memory_space<vmem>>, %arg8: memref<1x128xf32, #tpu.memory_space<vmem>>, %arg9: memref<2x8x128xf32, #tpu.memory_space<vmem>>) attributes {dimension_semantics = [#tpu.dimension_semantics<parallel>], iteration_bounds = array<i64: 1>, scalar_prefetch = 0 : i64, scratch_operands = 0 : i64, tpu.core_type = #tpu.core_type<tc>, window_params = [{transform_indices = @transform_0, window_bounds = array<i64: 2, 8, 128>}, {transform_indices = @transform_1, window_bounds = array<i64: 2, 8, 128>}, {transform_indices = @transform_2, window_bounds = array<i64: 2, 8, 128>}, {pipeline_mode = #tpu.pipeline_mode<synchronous>, transform_indices = @transform_3, window_bounds = array<i64: 128, 256>}, {pipeline_mode = #tpu.pipeline_mode<synchronous>, transform_indices = @transform_4, window_bounds = array<i64: 128, 256>}, {pipeline_mode = #tpu.pipeline_mode<synchronous>, transform_indices = @transform_5, window_bounds = array<i64: 128, 256>}, {pipeline_mode = #tpu.pipeline_mode<synchronous>, transform_indices = @transform_6, window_bounds = array<i64: 256, 128>}, {pipeline_mode = #tpu.pipeline_mode<synchronous>, transform_indices = @transform_7, window_bounds = array<i64: 1, 128>}, {transform_indices = @transform_8, window_bounds = array<i64: 2, 8, 128>}]} {
    %c0 = arith.constant 0 : index
    %c0_0 = arith.constant 0 : index
    %c0_1 = arith.constant 0 : index
    %0 = vector.load %arg1[%c0, %c0_0, %c0_1] : memref<2x8x128xbf16, #tpu.memory_space<vmem>>, vector<2x8x128xbf16>
    %1 = vector.shape_cast %0 : vector<2x8x128xbf16> to vector<16x128xbf16>
    %c0_2 = arith.constant 0 : index
    %c0_3 = arith.constant 0 : index
    %c0_4 = arith.constant 0 : index
    %2 = vector.load %arg2[%c0_2, %c0_3, %c0_4] : memref<2x8x128xbf16, #tpu.memory_space<vmem>>, vector<2x8x128xbf16>
    %3 = vector.shape_cast %2 : vector<2x8x128xbf16> to vector<16x128xbf16>
    %c0_5 = arith.constant 0 : index
    %c0_6 = arith.constant 0 : index
    %c0_7 = arith.constant 0 : index
    %4 = vector.load %arg3[%c0_5, %c0_6, %c0_7] : memref<2x8x128xbf16, #tpu.memory_space<vmem>>, vector<2x8x128xbf16>
    %5 = vector.shape_cast %4 : vector<2x8x128xbf16> to vector<16x128xbf16>
    %c0_8 = arith.constant 0 : index
    %c0_9 = arith.constant 0 : index
    %6 = vector.load %arg4[%c0_8, %c0_9] : memref<128x256xbf16, #tpu.memory_space<vmem>>, vector<128x256xbf16>
    %cst = arith.constant dense<0.000000e+00> : vector<16x256xf32>
    %7 = tpu.matmul %1, %6, %cst {dimension_numbers = #tpu.dot_dimension_numbers<[1], [0], [0], [1], [0, 0, 1, 1], [], []>} : vector<16x128xbf16>, vector<128x256xbf16>, vector<16x256xf32> -> vector<16x256xf32>
    %8 = arith.truncf %7 : vector<16x256xf32> to vector<16x256xbf16>
    %c0_10 = arith.constant 0 : index
    %c0_11 = arith.constant 0 : index
    %9 = vector.load %arg5[%c0_10, %c0_11] : memref<128x256xbf16, #tpu.memory_space<vmem>>, vector<128x256xbf16>
    %cst_12 = arith.constant dense<0.000000e+00> : vector<16x256xf32>
    %10 = tpu.matmul %3, %9, %cst_12 {dimension_numbers = #tpu.dot_dimension_numbers<[1], [0], [0], [1], [0, 0, 1, 1], [], []>} : vector<16x128xbf16>, vector<128x256xbf16>, vector<16x256xf32> -> vector<16x256xf32>
    %11 = arith.truncf %10 : vector<16x256xf32> to vector<16x256xbf16>
    %c0_13 = arith.constant 0 : index
    %c0_14 = arith.constant 0 : index
    %12 = vector.load %arg6[%c0_13, %c0_14] : memref<128x256xbf16, #tpu.memory_space<vmem>>, vector<128x256xbf16>
    %cst_15 = arith.constant dense<0.000000e+00> : vector<16x256xf32>
    %13 = tpu.matmul %5, %12, %cst_15 {dimension_numbers = #tpu.dot_dimension_numbers<[1], [0], [0], [1], [0, 0, 1, 1], [], []>} : vector<16x128xbf16>, vector<128x256xbf16>, vector<16x256xf32> -> vector<16x256xf32>
    %14 = arith.truncf %13 : vector<16x256xf32> to vector<16x256xbf16>
    %15 = vector.shape_cast %8 : vector<16x256xbf16> to vector<2x8x256xbf16>
    %16 = vector.shape_cast %11 : vector<16x256xbf16> to vector<2x8x256xbf16>
    %17 = vector.shape_cast %14 : vector<16x256xbf16> to vector<2x8x256xbf16>
    %cst_16 = arith.constant 0.000000e+00 : f32
    %18 = vector.broadcast %cst_16 : f32 to vector<16x128xf32>
    %19 = vector.extract_strided_slice %15 {offsets = [0, 0, 0], sizes = [2, 8, 128], strides = [1, 1, 1]} : vector<2x8x256xbf16> to vector<2x8x128xbf16>
    %20 = vector.extract_strided_slice %16 {offsets = [0, 0, 0], sizes = [2, 8, 128], strides = [1, 1, 1]} : vector<2x8x256xbf16> to vector<2x8x128xbf16>
    %21 = vector.extract_strided_slice %17 {offsets = [0, 0, 0], sizes = [2, 8, 128], strides = [1, 1, 1]} : vector<2x8x256xbf16> to vector<2x8x128xbf16>
    %cst_17 = arith.constant dense<0.000000e+00> : vector<2x8x8xf32>
    %22 = tpu.matmul %19, %20, %cst_17 {dimension_numbers = #tpu.dot_dimension_numbers<[2], [2], [1], [1], [0, 0, 0, 1, 1, 1], [0], [0]>} : vector<2x8x128xbf16>, vector<2x8x128xbf16>, vector<2x8x8xf32> -> vector<2x8x8xf32>
    %cst_18 = arith.constant dense<0xFF800000> : vector<2x8xf32>
    %23 = vector.multi_reduction <maximumf>, %22, %cst_18 [2] : vector<2x8x8xf32> to vector<2x8xf32>
    %24 = vector.shape_cast %23 : vector<2x8xf32> to vector<2x8x1xf32>
    %25 = vector.broadcast %24 : vector<2x8x1xf32> to vector<2x8x8xf32>
    %26 = arith.subf %22, %25 : vector<2x8x8xf32>
    %27 = math.exp %26 : vector<2x8x8xf32>
    %cst_19 = arith.constant dense<0.000000e+00> : vector<2x8xf32>
    %28 = vector.multi_reduction <add>, %27, %cst_19 [2] : vector<2x8x8xf32> to vector<2x8xf32>
    %29 = vector.shape_cast %28 : vector<2x8xf32> to vector<2x8x1xf32>
    %30 = tpu.reciprocal %29 {approx = true} : vector<2x8x1xf32> -> vector<2x8x1xf32>
    %31 = vector.broadcast %30 : vector<2x8x1xf32> to vector<2x8x8xf32>
    %32 = arith.mulf %27, %31 : vector<2x8x8xf32>
    %33 = arith.truncf %32 : vector<2x8x8xf32> to vector<2x8x8xbf16>
    %cst_20 = arith.constant dense<0.000000e+00> : vector<2x8x128xf32>
    %34 = tpu.matmul %33, %21, %cst_20 {dimension_numbers = #tpu.dot_dimension_numbers<[2], [1], [1], [2], [0, 0, 0, 1, 1, 2], [0], [0]>} : vector<2x8x8xbf16>, vector<2x8x128xbf16>, vector<2x8x128xf32> -> vector<2x8x128xf32>
    %35 = vector.shape_cast %34 : vector<2x8x128xf32> to vector<16x128xf32>
    %36 = arith.truncf %35 : vector<16x128xf32> to vector<16x128xbf16>
    %c0_21 = arith.constant 0 : index
    %c0_22 = arith.constant 0 : index
    %37 = vector.load %arg7[%c0_21, %c0_22] : memref<256x128xbf16, #tpu.memory_space<vmem>>, vector<128x128xbf16>
    %cst_23 = arith.constant dense<0.000000e+00> : vector<16x128xf32>
    %38 = tpu.matmul %36, %37, %cst_23 {dimension_numbers = #tpu.dot_dimension_numbers<[1], [0], [0], [1], [0, 0, 1, 1], [], []>} : vector<16x128xbf16>, vector<128x128xbf16>, vector<16x128xf32> -> vector<16x128xf32>
    %39 = arith.addf %18, %38 : vector<16x128xf32>
    %40 = vector.extract_strided_slice %15 {offsets = [0, 0, 128], sizes = [2, 8, 128], strides = [1, 1, 1]} : vector<2x8x256xbf16> to vector<2x8x128xbf16>
    %41 = vector.extract_strided_slice %16 {offsets = [0, 0, 128], sizes = [2, 8, 128], strides = [1, 1, 1]} : vector<2x8x256xbf16> to vector<2x8x128xbf16>
    %42 = vector.extract_strided_slice %17 {offsets = [0, 0, 128], sizes = [2, 8, 128], strides = [1, 1, 1]} : vector<2x8x256xbf16> to vector<2x8x128xbf16>
    %cst_24 = arith.constant dense<0.000000e+00> : vector<2x8x8xf32>
    %43 = tpu.matmul %40, %41, %cst_24 {dimension_numbers = #tpu.dot_dimension_numbers<[2], [2], [1], [1], [0, 0, 0, 1, 1, 1], [0], [0]>} : vector<2x8x128xbf16>, vector<2x8x128xbf16>, vector<2x8x8xf32> -> vector<2x8x8xf32>
    %cst_25 = arith.constant dense<0xFF800000> : vector<2x8xf32>
    %44 = vector.multi_reduction <maximumf>, %43, %cst_25 [2] : vector<2x8x8xf32> to vector<2x8xf32>
    %45 = vector.shape_cast %44 : vector<2x8xf32> to vector<2x8x1xf32>
    %46 = vector.broadcast %45 : vector<2x8x1xf32> to vector<2x8x8xf32>
    %47 = arith.subf %43, %46 : vector<2x8x8xf32>
    %48 = math.exp %47 : vector<2x8x8xf32>
    %cst_26 = arith.constant dense<0.000000e+00> : vector<2x8xf32>
    %49 = vector.multi_reduction <add>, %48, %cst_26 [2] : vector<2x8x8xf32> to vector<2x8xf32>
    %50 = vector.shape_cast %49 : vector<2x8xf32> to vector<2x8x1xf32>
    %51 = tpu.reciprocal %50 {approx = true} : vector<2x8x1xf32> -> vector<2x8x1xf32>
    %52 = vector.broadcast %51 : vector<2x8x1xf32> to vector<2x8x8xf32>
    %53 = arith.mulf %48, %52 : vector<2x8x8xf32>
    %54 = arith.truncf %53 : vector<2x8x8xf32> to vector<2x8x8xbf16>
    %cst_27 = arith.constant dense<0.000000e+00> : vector<2x8x128xf32>
    %55 = tpu.matmul %54, %42, %cst_27 {dimension_numbers = #tpu.dot_dimension_numbers<[2], [1], [1], [2], [0, 0, 0, 1, 1, 2], [0], [0]>} : vector<2x8x8xbf16>, vector<2x8x128xbf16>, vector<2x8x128xf32> -> vector<2x8x128xf32>
    %56 = vector.shape_cast %55 : vector<2x8x128xf32> to vector<16x128xf32>
    %57 = arith.truncf %56 : vector<16x128xf32> to vector<16x128xbf16>
    %c128 = arith.constant 128 : index
    %c0_28 = arith.constant 0 : index
    %58 = vector.load %arg7[%c128, %c0_28] : memref<256x128xbf16, #tpu.memory_space<vmem>>, vector<128x128xbf16>
    %cst_29 = arith.constant dense<0.000000e+00> : vector<16x128xf32>
    %59 = tpu.matmul %57, %58, %cst_29 {dimension_numbers = #tpu.dot_dimension_numbers<[1], [0], [0], [1], [0, 0, 1, 1], [], []>} : vector<16x128xbf16>, vector<128x128xbf16>, vector<16x128xf32> -> vector<16x128xf32>
    %60 = arith.addf %39, %59 : vector<16x128xf32>
    %c0_30 = arith.constant 0 : index
    %c0_31 = arith.constant 0 : index
    %61 = vector.load %arg8[%c0_30, %c0_31] : memref<1x128xf32, #tpu.memory_space<vmem>>, vector<1x128xf32>
    %62 = vector.broadcast %61 : vector<1x128xf32> to vector<16x128xf32>
    %63 = arith.addf %60, %62 : vector<16x128xf32>
    %64 = vector.shape_cast %63 : vector<16x128xf32> to vector<2x8x128xf32>
    %c0_32 = arith.constant 0 : index
    %c0_33 = arith.constant 0 : index
    %c0_34 = arith.constant 0 : index
    %65 = vector.load %arg9[%c0_32, %c0_33, %c0_34] : memref<2x8x128xf32, #tpu.memory_space<vmem>>, vector<2x8x128xf32>
    tpu.vector_store %arg9[%c0_32, %c0_33, %c0_34], %64 {strides = array<i32>} : memref<2x8x128xf32, #tpu.memory_space<vmem>>, vector<2x8x128xf32>,
    return
  }
  func.func @transform_0(%arg0: i32) -> (i32, i32, i32) {
    %c0_i32 = arith.constant 0 : i32
    %c0_i32_0 = arith.constant 0 : i32
    %c0_i32_1 = arith.constant 0 : i32
    return %arg0, %c0_i32, %c0_i32_0 : i32, i32, i32
  }
  func.func @transform_1(%arg0: i32) -> (i32, i32, i32) {
    %c0_i32 = arith.constant 0 : i32
    %c0_i32_0 = arith.constant 0 : i32
    %c0_i32_1 = arith.constant 0 : i32
    return %arg0, %c0_i32, %c0_i32_0 : i32, i32, i32
  }
  func.func @transform_2(%arg0: i32) -> (i32, i32, i32) {
    %c0_i32 = arith.constant 0 : i32
    %c0_i32_0 = arith.constant 0 : i32
    %c0_i32_1 = arith.constant 0 : i32
    return %arg0, %c0_i32, %c0_i32_0 : i32, i32, i32
  }
  func.func @transform_3(%arg0: i32) -> (i32, i32) {
    %c0_i32 = arith.constant 0 : i32
    %c0_i32_0 = arith.constant 0 : i32
    %c0_i32_1 = arith.constant 0 : i32
    return %c0_i32, %c0_i32_0 : i32, i32
  }
  func.func @transform_4(%arg0: i32) -> (i32, i32) {
    %c0_i32 = arith.constant 0 : i32
    %c0_i32_0 = arith.constant 0 : i32
    %c0_i32_1 = arith.constant 0 : i32
    return %c0_i32, %c0_i32_0 : i32, i32
  }
  func.func @transform_5(%arg0: i32) -> (i32, i32) {
    %c0_i32 = arith.constant 0 : i32
    %c0_i32_0 = arith.constant 0 : i32
    %c0_i32_1 = arith.constant 0 : i32
    return %c0_i32, %c0_i32_0 : i32, i32
  }
  func.func @transform_6(%arg0: i32) -> (i32, i32) {
    %c0_i32 = arith.constant 0 : i32
    %c0_i32_0 = arith.constant 0 : i32
    %c0_i32_1 = arith.constant 0 : i32
    return %c0_i32, %c0_i32_0 : i32, i32
  }
  func.func @transform_7(%arg0: i32) -> (i32, i32) {
    %c0_i32 = arith.constant 0 : i32
    %c0_i32_0 = arith.constant 0 : i32
    %c0_i32_1 = arith.constant 0 : i32
    return %c0_i32, %c0_i32_0 : i32, i32
  }
  func.func @transform_8(%arg0: i32) -> (i32, i32, i32) {
    %c0_i32 = arith.constant 0 : i32
    %c0_i32_0 = arith.constant 0 : i32
    %c0_i32_1 = arith.constant 0 : i32
    return %arg0, %c0_i32, %c0_i32_0 : i32, i32, i32
  }
}

</mosaic_0001>

<llo_original>
// kernel: tpu_custom_call.1
$region0: #{tpu_custom_call.1}
  #allocation0 [shape = 'u32[]', space=smem, size = 0x4, offset = 0x4, fixed_abs, tag = 'smem constant byte address 0x4 - core index']
  #allocation1 [shape = 'u32[144,128]{1,0:T(1,128)}', space=vmem, size = 0x12000, scoped, tag = 'internal scratch']
  %s0 = inlined_call_operand.hbm [shape: bf16[2,8,128], index: 0, kind: input, shape index: {}]
  %s1 = inlined_call_operand.hbm [shape: bf16[2,8,128], index: 1, kind: input, shape index: {}]
  %s2 = inlined_call_operand.hbm [shape: bf16[2,8,128], index: 2, kind: input, shape index: {}]
  %s3 = inlined_call_operand.hbm [shape: bf16[128,256], index: 3, kind: input, shape index: {}]
  %s4 = inlined_call_operand.hbm [shape: bf16[128,256], index: 4, kind: input, shape index: {}]
  %s5 = inlined_call_operand.hbm [shape: bf16[128,256], index: 5, kind: input, shape index: {}]
  %s6 = inlined_call_operand.hbm [shape: bf16[256,128], index: 6, kind: input, shape index: {}]
  %s7 = inlined_call_operand.vmem [shape: f32[1,128], index: 7, kind: input, shape index: {}]
  %s8 = inlined_call_operand.hbm [shape: f32[2,8,128], index: 8, kind: output, shape index: {}]
  %s9 = sld [smem:[#allocation0]]
  $region70: #{tpu_custom_call.1} parent=0
    _
  %s11 = ssub.s32 1, %s9
  %s12 = scalar_select 0, %s11, %s9
  $region1: #{tpu_custom_call.1} parent=0
    #allocation2 [shape = 'u8[4096]{0}', space=vmem, size = 0x1000, scoped, tag = 'input window, operand 0, single buffered']
    #allocation3 [shape = 's32[1]{0}', space=sflag, size = 0x4, scoped, tag = 'scoped memory for tpu_custom_call.1']
    #allocation4 [shape = 's32[1]{0}', space=sflag, size = 0x4, scoped, tag = 'scoped memory for tpu_custom_call.1']
    #allocation5 [shape = 'u8[4096]{0}', space=vmem, size = 0x1000, scoped, tag = 'input window, operand 1, single buffered']
    #allocation6 [shape = 's32[1]{0}', space=sflag, size = 0x4, scoped, tag = 'scoped memory for tpu_custom_call.1']
    #allocation7 [shape = 'u8[4096]{0}', space=vmem, size = 0x1000, scoped, tag = 'input window, operand 2, single buffered']
    #allocation8 [shape = 'u8[65536]{0}', space=vmem, size = 0x10000, scoped, tag = 'input window, operand 3, single buffered']
    #allocation9 [shape = 's32[1]{0}', space=sflag, size = 0x4, scoped, tag = 'scoped memory for tpu_custom_call.1']
    #allocation10 [shape = 'u8[65536]{0}', space=vmem, size = 0x10000, scoped, tag = 'input window, operand 4, single buffered']
    #allocation11 [shape = 'u8[65536]{0}', space=vmem, size = 0x10000, scoped, tag = 'input window, operand 5, single buffered']
    #allocation12 [shape = 's32[1]{0}', space=sflag, size = 0x4, scoped, tag = 'scoped memory for tpu_custom_call.1']
    #allocation13 [shape = 'u8[65536]{0}', space=vmem, size = 0x10000, scoped, tag = 'input window, operand 6, single buffered']
    #allocation14 [shape = 'u8[8192]{0}', space=vmem, size = 0x2000, scoped, tag = 'output window, operand 0, single buffered']
    %13 = vsyncpa [#allocation3], 0
    %14 = vsyncpa [#allocation6], 0
    %15 = vsyncpa [#allocation9], 0
    %16 = vsyncpa [#allocation12], 0
    %17 = vsyncpa [#allocation4], 0
    // Predicated region
    $region2: #{tpu_custom_call.1} parent=1 // pred_check
      _
    $region3: #{tpu_custom_call.1} parent=1 // pred_check_branch
      %19 = sbr.rel (0) target = $region5
    $region4: #{tpu_custom_call.1} parent=1 // pred_region
      %s21 = ssub.s32 128, 128
      %22 = vsyncadd [#allocation3], %s21
      %s23 = sshll.u32 [#allocation2], 4
      %s24 = int_to_ptr.vmem [resolvable:$true] %s23
      %29 = dma.hbm_to_vmem [thread:$0]  %s0, 128, %s24, [#allocation3], 64, 64, 4
    $region5: #{tpu_custom_call.1} parent=1 // pred_fallthru
      _
    // Predicated region
    $region6: #{tpu_custom_call.1} parent=1 // pred_check
      _
    $region7: #{tpu_custom_call.1} parent=1 // pred_check_branch
      %31 = sbr.rel (0) target = $region9
    $region8: #{tpu_custom_call.1} parent=1 // pred_region
      %s33 = ssub.s32 128, 128
      %34 = vsyncadd [#allocation6], %s33
      %s35 = sshll.u32 [#allocation5], 4
      %s36 = int_to_ptr.vmem [resolvable:$true] %s35
      %41 = dma.hbm_to_vmem [thread:$0]  %s1, 128, %s36, [#allocation6], 64, 64, 4
    $region9: #{tpu_custom_call.1} parent=1 // pred_fallthru
      _
    // Predicated region
    $region10: #{tpu_custom_call.1} parent=1 // pred_check
      _
    $region11: #{tpu_custom_call.1} parent=1 // pred_check_branch
      %43 = sbr.rel (0) target = $region13
    $region12: #{tpu_custom_call.1} parent=1 // pred_region
      %s45 = ssub.s32 128, 128
      %46 = vsyncadd [#allocation6], %s45
      %s47 = sshll.u32 [#allocation7], 4
      %s48 = int_to_ptr.vmem [resolvable:$true] %s47
      %53 = dma.hbm_to_vmem [thread:$0]  %s2, 128, %s48, [#allocation6], 64, 64, 4
    $region13: #{tpu_custom_call.1} parent=1 // pred_fallthru
      _
    // Predicated region
    $region14: #{tpu_custom_call.1} parent=1 // pred_check
      _
    $region15: #{tpu_custom_call.1} parent=1 // pred_check_branch
      %55 = sbr.rel (0) target = $region17
    $region16: #{tpu_custom_call.1} parent=1 // pred_region
      %s57 = ssub.s32 2048, 2048
      %58 = vsyncadd [#allocation9], %s57
      %s59 = sshll.u32 [#allocation8], 4
      %s60 = int_to_ptr.vmem [resolvable:$true] %s59
      %65 = dma.hbm_to_vmem [thread:$0]  %s3, 2048, %s60, [#allocation9], 128, 128, 8
    $region17: #{tpu_custom_call.1} parent=1 // pred_fallthru
      _
    // Predicated region
    $region18: #{tpu_custom_call.1} parent=1 // pred_check
      _
    $region19: #{tpu_custom_call.1} parent=1 // pred_check_branch
      %67 = sbr.rel (0) target = $region21
    $region20: #{tpu_custom_call.1} parent=1 // pred_region
      %s69 = ssub.s32 2048, 2048
      %70 = vsyncadd [#allocation9], %s69
      %s71 = sshll.u32 [#allocation10], 4
      %s72 = int_to_ptr.vmem [resolvable:$true] %s71
      %77 = dma.hbm_to_vmem [thread:$0]  %s4, 2048, %s72, [#allocation9], 128, 128, 8
    $region21: #{tpu_custom_call.1} parent=1 // pred_fallthru
      _
    // Predicated region
    $region22: #{tpu_custom_call.1} parent=1 // pred_check
      _
    $region23: #{tpu_custom_call.1} parent=1 // pred_check_branch
      %79 = sbr.rel (0) target = $region25
    $region24: #{tpu_custom_call.1} parent=1 // pred_region
      %s81 = ssub.s32 2048, 2048
      %82 = vsyncadd [#allocation12], %s81
      %s83 = sshll.u32 [#allocation11], 4
      %s84 = int_to_ptr.vmem [resolvable:$true] %s83
      %89 = dma.hbm_to_vmem [thread:$0]  %s5, 2048, %s84, [#allocation12], 128, 128, 8
    $region25: #{tpu_custom_call.1} parent=1 // pred_fallthru
      _
    // Predicated region
    $region26: #{tpu_custom_call.1} parent=1 // pred_check
      _
    $region27: #{tpu_custom_call.1} parent=1 // pred_check_branch
      %91 = sbr.rel (0) target = $region29
    $region28: #{tpu_custom_call.1} parent=1 // pred_region
      %s93 = ssub.s32 2048, 2048
      %94 = vsyncadd [#allocation12], %s93
      %s95 = sshll.u32 [#allocation13], 4
      %s96 = int_to_ptr.vmem [resolvable:$true] %s95
      %101 = dma.hbm_to_vmem [thread:$0]  %s6, 2048, %s96, [#allocation12], 64, 64, 4
    $region29: #{tpu_custom_call.1} parent=1 // pred_fallthru
      _
    // Predicated region
    $region30: #{tpu_custom_call.1} parent=1 // pred_check
      _
    $region31: #{tpu_custom_call.1} parent=1 // pred_check_branch
      %103 = sbr.rel (0) target = $region33
    $region32: #{tpu_custom_call.1} parent=1 // pred_region
      _
    $region33: #{tpu_custom_call.1} parent=1 // pred_fallthru
      _
    // Predicated region
    $region34: #{tpu_custom_call.1} parent=1 // pred_check
      _
    $region35: #{tpu_custom_call.1} parent=1 // pred_check_branch
      %105 = sbr.rel (0) target = $region37
    $region36: #{tpu_custom_call.1} parent=1 // pred_region
      %106 = dma.done [#allocation3], 128
    $region37: #{tpu_custom_call.1} parent=1 // pred_fallthru
      _
    // Predicated region
    $region38: #{tpu_custom_call.1} parent=1 // pred_check
      _
    $region39: #{tpu_custom_call.1} parent=1 // pred_check_branch
      %108 = sbr.rel (0) target = $region41
    $region40: #{tpu_custom_call.1} parent=1 // pred_region
      %109 = dma.done [#allocation6], 128
    $region41: #{tpu_custom_call.1} parent=1 // pred_fallthru
      _
    // Predicated region
    $region42: #{tpu_custom_call.1} parent=1 // pred_check
      _
    $region43: #{tpu_custom_call.1} parent=1 // pred_check_branch
      %111 = sbr.rel (0) target = $region45
    $region44: #{tpu_custom_call.1} parent=1 // pred_region
      %112 = dma.done [#allocation6], 128
    $region45: #{tpu_custom_call.1} parent=1 // pred_fallthru
      _
    // Predicated region
    $region46: #{tpu_custom_call.1} parent=1 // pred_check
      _
    $region47: #{tpu_custom_call.1} parent=1 // pred_check_branch
      %114 = sbr.rel (0) target = $region49
    $region48: #{tpu_custom_call.1} parent=1 // pred_region
      %115 = dma.done [#allocation9], 2048
    $region49: #{tpu_custom_call.1} parent=1 // pred_fallthru
      _
    // Predicated region
    $region50: #{tpu_custom_call.1} parent=1 // pred_check
      _
    $region51: #{tpu_custom_call.1} parent=1 // pred_check_branch
      %117 = sbr.rel (0) target = $region53
    $region52: #{tpu_custom_call.1} parent=1 // pred_region
      %118 = dma.done [#allocation9], 2048
    $region53: #{tpu_custom_call.1} parent=1 // pred_fallthru
      _
    // Predicated region
    $region54: #{tpu_custom_call.1} parent=1 // pred_check
      _
    $region55: #{tpu_custom_call.1} parent=1 // pred_check_branch
      %120 = sbr.rel (0) target = $region57
    $region56: #{tpu_custom_call.1} parent=1 // pred_region
      %121 = dma.done [#allocation12], 2048
    $region57: #{tpu_custom_call.1} parent=1 // pred_fallthru
      _
    // Predicated region
    $region58: #{tpu_custom_call.1} parent=1 // pred_check
      _
    $region59: #{tpu_custom_call.1} parent=1 // pred_check_branch
      %123 = sbr.rel (0) target = $region61
    $region60: #{tpu_custom_call.1} parent=1 // pred_region
      %124 = dma.done [#allocation12], 2048
    $region61: #{tpu_custom_call.1} parent=1 // pred_fallthru
      _
    %v126 = vld [vmem:[#allocation2] sm:$0xf]
    %v127 = vld [vmem:[#allocation2 + $0x4] sm:$0xf]
    %v128 = vld [vmem:[#allocation5] sm:$0xf]
    %v129 = vld [vmem:[#allocation5 + $0x4] sm:$0xf]
    %v130 = vld [vmem:[#allocation7] sm:$0xf]
    %v131 = vld [vmem:[#allocation7 + $0x4] sm:$0xf]
    %v132 = vld [vmem:[#allocation8] sm:$0xff]
    %v133 = vld [vmem:[#allocation8 + $0x8] sm:$0xff]
    %v134 = vld [vmem:[#allocation8 + $0x10] sm:$0xff]
    %v135 = vld [vmem:[#allocation8 + $0x18] sm:$0xff]
    %v136 = vld [vmem:[#allocation8 + $0x20] sm:$0xff]
    %v137 = vld [vmem:[#allocation8 + $0x28] sm:$0xff]
    %v138 = vld [vmem:[#allocation8 + $0x30] sm:$0xff]
    %v139 = vld [vmem:[#allocation8 + $0x38] sm:$0xff]
    %v140 = vld [vmem:[#allocation8 + $0x40] sm:$0xff]
    %v141 = vld [vmem:[#allocation8 + $0x48] sm:$0xff]
    %v142 = vld [vmem:[#allocation8 + $0x50] sm:$0xff]
    %v143 = vld [vmem:[#allocation8 + $0x58] sm:$0xff]
    %v144 = vld [vmem:[#allocation8 + $0x60] sm:$0xff]
    %v145 = vld [vmem:[#allocation8 + $0x68] sm:$0xff]
    %v146 = vld [vmem:[#allocation8 + $0x70] sm:$0xff]
    %v147 = vld [vmem:[#allocation8 + $0x78] sm:$0xff]
    %v150 = vunpack.c.l.b16 %v126
    %v151 = vunpack.c.l.b16 %v127
    %v152 = vpack.c.b16 %v151, %v150
    %v170 = vunpack.c.l.b16 %v132
    %v171 = vunpack.c.h.b16 %v132
    %v172 = vunpack.c.l.b16 %v133
    %v173 = vunpack.c.h.b16 %v133
    %v174 = vunpack.c.l.b16 %v134
    %v175 = vunpack.c.h.b16 %v134
    %v176 = vunpack.c.l.b16 %v135
    %v177 = vunpack.c.h.b16 %v135
    %v178 = vunpack.c.l.b16 %v136
    %v179 = vunpack.c.h.b16 %v136
    %v180 = vunpack.c.l.b16 %v137
    %v181 = vunpack.c.h.b16 %v137
    %v182 = vunpack.c.l.b16 %v138
    %v183 = vunpack.c.h.b16 %v138
    %v184 = vunpack.c.l.b16 %v139
    %v185 = vunpack.c.h.b16 %v139
    %v186 = vunpack.c.l.b16 %v140
    %v187 = vunpack.c.h.b16 %v140
    %v188 = vunpack.c.l.b16 %v141
    %v189 = vunpack.c.h.b16 %v141
    %v190 = vunpack.c.l.b16 %v142
    %v191 = vunpack.c.h.b16 %v142
    %v192 = vunpack.c.l.b16 %v143
    %v193 = vunpack.c.h.b16 %v143
    %v194 = vunpack.c.l.b16 %v144
    %v195 = vunpack.c.h.b16 %v144
    %v196 = vunpack.c.l.b16 %v145
    %v197 = vunpack.c.h.b16 %v145
    %v198 = vunpack.c.l.b16 %v146
    %v199 = vunpack.c.h.b16 %v146
    %v200 = vunpack.c.l.b16 %v147
    %v201 = vunpack.c.h.b16 %v147
    %v202 = vpack.c.b16 %v172, %v170
    %v203 = vpack.c.b16 %v173, %v171
    %v204 = vpack.c.b16 %v176, %v174
    %v205 = vpack.c.b16 %v177, %v175
    %v206 = vpack.c.b16 %v180, %v178
    %v207 = vpack.c.b16 %v181, %v179
    %v208 = vpack.c.b16 %v184, %v182
    %v209 = vpack.c.b16 %v185, %v183
    %v210 = vpack.c.b16 %v188, %v186
    %v211 = vpack.c.b16 %v189, %v187
    %v212 = vpack.c.b16 %v192, %v190
    %v213 = vpack.c.b16 %v193, %v191
    %v214 = vpack.c.b16 %v196, %v194
    %v215 = vpack.c.b16 %v197, %v195
    %v216 = vpack.c.b16 %v200, %v198
    %v217 = vpack.c.b16 %v201, %v199
    %234 = vmatprep.subr.bf16.mxu0 %v217
    %235 = vmatpush1.bf16.msra.mxu0 %v216
    %236 = vmatprep.subr.bf16.mxu0 %v215
    %237 = vmatpush1.bf16.msra.mxu0 %v214
    %238 = vmatprep.subr.bf16.mxu0 %v213
    %239 = vmatpush1.bf16.msra.mxu0 %v212
    %240 = vmatprep.subr.bf16.mxu0 %v211
    %241 = vmatpush1.bf16.msra.mxu0 %v210
    %242 = vmatprep.subr.bf16.mxu0 %v209
    %243 = vmatpush1.bf16.msra.mxu0 %v208
    %244 = vmatprep.subr.bf16.mxu0 %v207
    %245 = vmatpush1.bf16.msra.mxu0 %v206
    %246 = vmatprep.subr.bf16.mxu0 %v205
    %247 = vmatpush1.bf16.msra.mxu0 %v204
    %248 = vmatprep.subr.bf16.mxu0 %v203
    %249 = vmatpush1.bf16.msra.mxu0 %v202
    %250 = vmatprep.subr.bf16.mxu0 0
    %251 = vmatpush2.bf16.msra.mxu0 0
    %252 = vmatprep.subr.bf16.mxu0 0
    %253 = vmatpush2.bf16.msra.mxu0 0
    %254 = vmatprep.subr.bf16.mxu0 0
    %255 = vmatpush2.bf16.msra.mxu0 0
    %256 = vmatprep.subr.bf16.mxu0 0
    %257 = vmatpush2.bf16.msra.mxu0 0
    %258 = vmatprep.subr.bf16.mxu0 0
    %259 = vmatpush2.bf16.msra.mxu0 0
    %260 = vmatprep.subr.bf16.mxu0 0
    %261 = vmatpush2.bf16.msra.mxu0 0
    %262 = vmatprep.subr.bf16.mxu0 0
    %263 = vmatpush2.bf16.msra.mxu0 0
    %264 = vmatprep.subr.bf16.mxu0 0
    %265 = vmatpush2.bf16.msra.mxu0 0
    %266 = vmatprep.mubr.bf16.mxu0 0
    %267 = vmatmul.mubr.bf16.gmra.mxu0 %v152
    %v268 = vpop.f32.mrf.mxu0
    %v269 = vadd.f32 0.0, %v268
    %v270 = vpop.f32.mrf.mxu0
    %v271 = vadd.f32 0.0, %v270
    %v272 = vpop.f32.mrf.mxu0
    %v273 = vadd.f32 0.0, %v272
    %v274 = vpop.f32.mrf.mxu0
    %v275 = vadd.f32 0.0, %v274
    %276 = vdwg.mxu0
    %v277 = vpack.c.bf16 %v273, %v269
    %v278 = vpack.c.bf16 %v275, %v271
    %v279 = vld [vmem:[#allocation10] sm:$0xff]
    %v280 = vld [vmem:[#allocation10 + $0x8] sm:$0xff]
    %v281 = vld [vmem:[#allocation10 + $0x10] sm:$0xff]
    %v282 = vld [vmem:[#allocation10 + $0x18] sm:$0xff]
    %v283 = vld [vmem:[#allocation10 + $0x20] sm:$0xff]
    %v284 = vld [vmem:[#allocation10 + $0x28] sm:$0xff]
    %v285 = vld [vmem:[#allocation10 + $0x30] sm:$0xff]
    %v286 = vld [vmem:[#allocation10 + $0x38] sm:$0xff]
    %v287 = vld [vmem:[#allocation10 + $0x40] sm:$0xff]
    %v288 = vld [vmem:[#allocation10 + $0x48] sm:$0xff]
    %v289 = vld [vmem:[#allocation10 + $0x50] sm:$0xff]
    %v290 = vld [vmem:[#allocation10 + $0x58] sm:$0xff]
    %v291 = vld [vmem:[#allocation10 + $0x60] sm:$0xff]
    %v292 = vld [vmem:[#allocation10 + $0x68] sm:$0xff]
    %v293 = vld [vmem:[#allocation10 + $0x70] sm:$0xff]
    %v294 = vld [vmem:[#allocation10 + $0x78] sm:$0xff]
    %v297 = vunpack.c.l.b16 %v128
    %v298 = vunpack.c.l.b16 %v129
    %v299 = vpack.c.b16 %v298, %v297
    %v317 = vunpack.c.l.b16 %v279
    %v318 = vunpack.c.h.b16 %v279
    %v319 = vunpack.c.l.b16 %v280
    %v320 = vunpack.c.h.b16 %v280
    %v321 = vunpack.c.l.b16 %v281
    %v322 = vunpack.c.h.b16 %v281
    %v323 = vunpack.c.l.b16 %v282
    %v324 = vunpack.c.h.b16 %v282
    %v325 = vunpack.c.l.b16 %v283
    %v326 = vunpack.c.h.b16 %v283
    %v327 = vunpack.c.l.b16 %v284
    %v328 = vunpack.c.h.b16 %v284
    %v329 = vunpack.c.l.b16 %v285
    %v330 = vunpack.c.h.b16 %v285
    %v331 = vunpack.c.l.b16 %v286
    %v332 = vunpack.c.h.b16 %v286
    %v333 = vunpack.c.l.b16 %v287
    %v334 = vunpack.c.h.b16 %v287
    %v335 = vunpack.c.l.b16 %v288
    %v336 = vunpack.c.h.b16 %v288
    %v337 = vunpack.c.l.b16 %v289
    %v338 = vunpack.c.h.b16 %v289
    %v339 = vunpack.c.l.b16 %v290
    %v340 = vunpack.c.h.b16 %v290
    %v341 = vunpack.c.l.b16 %v291
    %v342 = vunpack.c.h.b16 %v291
    %v343 = vunpack.c.l.b16 %v292
    %v344 = vunpack.c.h.b16 %v292
    %v345 = vunpack.c.l.b16 %v293
    %v346 = vunpack.c.h.b16 %v293
    %v347 = vunpack.c.l.b16 %v294
    %v348 = vunpack.c.h.b16 %v294
    %v349 = vpack.c.b16 %v319, %v317
    %v350 = vpack.c.b16 %v320, %v318
    %v351 = vpack.c.b16 %v323, %v321
    %v352 = vpack.c.b16 %v324, %v322
    %v353 = vpack.c.b16 %v327, %v325
    %v354 = vpack.c.b16 %v328, %v326
    %v355 = vpack.c.b16 %v331, %v329
    %v356 = vpack.c.b16 %v332, %v330
    %v357 = vpack.c.b16 %v335, %v333
    %v358 = vpack.c.b16 %v336, %v334
    %v359 = vpack.c.b16 %v339, %v337
    %v360 = vpack.c.b16 %v340, %v338
    %v361 = vpack.c.b16 %v343, %v341
    %v362 = vpack.c.b16 %v344, %v342
    %v363 = vpack.c.b16 %v347, %v345
    %v364 = vpack.c.b16 %v348, %v346
    %381 = vmatprep.subr.bf16.mxu0 %v364
    %382 = vmatpush1.bf16.msra.mxu0 %v363
    %383 = vmatprep.subr.bf16.mxu0 %v362
    %384 = vmatpush1.bf16.msra.mxu0 %v361
    %385 = vmatprep.subr.bf16.mxu0 %v360
    %386 = vmatpush1.bf16.msra.mxu0 %v359
    %387 = vmatprep.subr.bf16.mxu0 %v358
    %388 = vmatpush1.bf16.msra.mxu0 %v357
    %389 = vmatprep.subr.bf16.mxu0 %v356
    %390 = vmatpush1.bf16.msra.mxu0 %v355
    %391 = vmatprep.subr.bf16.mxu0 %v354
    %392 = vmatpush1.bf16.msra.mxu0 %v353
    %393 = vmatprep.subr.bf16.mxu0 %v352
    %394 = vmatpush1.bf16.msra.mxu0 %v351
    %395 = vmatprep.subr.bf16.mxu0 %v350
    %396 = vmatpush1.bf16.msra.mxu0 %v349
    %397 = vmatprep.subr.bf16.mxu0 0
    %398 = vmatpush2.bf16.msra.mxu0 0
    %399 = vmatprep.subr.bf16.mxu0 0
    %400 = vmatpush2.bf16.msra.mxu0 0
    %401 = vmatprep.subr.bf16.mxu0 0
    %402 = vmatpush2.bf16.msra.mxu0 0
    %403 = vmatprep.subr.bf16.mxu0 0
    %404 = vmatpush2.bf16.msra.mxu0 0
    %405 = vmatprep.subr.bf16.mxu0 0
    %406 = vmatpush2.bf16.msra.mxu0 0
    %407 = vmatprep.subr.bf16.mxu0 0
    %408 = vmatpush2.bf16.msra.mxu0 0
    %409 = vmatprep.subr.bf16.mxu0 0
    %410 = vmatpush2.bf16.msra.mxu0 0
    %411 = vmatprep.subr.bf16.mxu0 0
    %412 = vmatpush2.bf16.msra.mxu0 0
    %413 = vmatprep.mubr.bf16.mxu0 0
    %414 = vmatmul.mubr.bf16.gmra.mxu0 %v299
    %v415 = vpop.f32.mrf.mxu0
    %v416 = vadd.f32 0.0, %v415
    %v417 = vpop.f32.mrf.mxu0
    %v418 = vadd.f32 0.0, %v417
    %v419 = vpop.f32.mrf.mxu0
    %v420 = vadd.f32 0.0, %v419
    %v421 = vpop.f32.mrf.mxu0
    %v422 = vadd.f32 0.0, %v421
    %423 = vdwg.mxu0
    %v424 = vpack.c.bf16 %v420, %v416
    %v425 = vpack.c.bf16 %v422, %v418
    %v426 = vld [vmem:[#allocation11] sm:$0xff]
    %v427 = vld [vmem:[#allocation11 + $0x8] sm:$0xff]
    %v428 = vld [vmem:[#allocation11 + $0x10] sm:$0xff]
    %v429 = vld [vmem:[#allocation11 + $0x18] sm:$0xff]
    %v430 = vld [vmem:[#allocation11 + $0x20] sm:$0xff]
    %v431 = vld [vmem:[#allocation11 + $0x28] sm:$0xff]
    %v432 = vld [vmem:[#allocation11 + $0x30] sm:$0xff]
    %v433 = vld [vmem:[#allocation11 + $0x38] sm:$0xff]
    %v434 = vld [vmem:[#allocation11 + $0x40] sm:$0xff]
    %v435 = vld [vmem:[#allocation11 + $0x48] sm:$0xff]
    %v436 = vld [vmem:[#allocation11 + $0x50] sm:$0xff]
    %v437 = vld [vmem:[#allocation11 + $0x58] sm:$0xff]
    %v438 = vld [vmem:[#allocation11 + $0x60] sm:$0xff]
    %v439 = vld [vmem:[#allocation11 + $0x68] sm:$0xff]
    %v440 = vld [vmem:[#allocation11 + $0x70] sm:$0xff]
    %v441 = vld [vmem:[#allocation11 + $0x78] sm:$0xff]
    %v444 = vunpack.c.l.b16 %v130
    %v445 = vunpack.c.l.b16 %v131
    %v446 = vpack.c.b16 %v445, %v444
    %v464 = vunpack.c.l.b16 %v426
    %v465 = vunpack.c.h.b16 %v426
    %v466 = vunpack.c.l.b16 %v427
    %v467 = vunpack.c.h.b16 %v427
    %v468 = vunpack.c.l.b16 %v428
    %v469 = vunpack.c.h.b16 %v428
    %v470 = vunpack.c.l.b16 %v429
    %v471 = vunpack.c.h.b16 %v429
    %v472 = vunpack.c.l.b16 %v430
    %v473 = vunpack.c.h.b16 %v430
    %v474 = vunpack.c.l.b16 %v431
    %v475 = vunpack.c.h.b16 %v431
    %v476 = vunpack.c.l.b16 %v432
    %v477 = vunpack.c.h.b16 %v432
    %v478 = vunpack.c.l.b16 %v433
    %v479 = vunpack.c.h.b16 %v433
    %v480 = vunpack.c.l.b16 %v434
    %v481 = vunpack.c.h.b16 %v434
    %v482 = vunpack.c.l.b16 %v435
    %v483 = vunpack.c.h.b16 %v435
    %v484 = vunpack.c.l.b16 %v436
    %v485 = vunpack.c.h.b16 %v436
    %v486 = vunpack.c.l.b16 %v437
    %v487 = vunpack.c.h.b16 %v437
    %v488 = vunpack.c.l.b16 %v438
    %v489 = vunpack.c.h.b16 %v438
    %v490 = vunpack.c.l.b16 %v439
    %v491 = vunpack.c.h.b16 %v439
    %v492 = vunpack.c.l.b16 %v440
    %v493 = vunpack.c.h.b16 %v440
    %v494 = vunpack.c.l.b16 %v441
    %v495 = vunpack.c.h.b16 %v441
    %v496 = vpack.c.b16 %v466, %v464
    %v497 = vpack.c.b16 %v467, %v465
    %v498 = vpack.c.b16 %v470, %v468
    %v499 = vpack.c.b16 %v471, %v469
    %v500 = vpack.c.b16 %v474, %v472
    %v501 = vpack.c.b16 %v475, %v473
    %v502 = vpack.c.b16 %v478, %v476
    %v503 = vpack.c.b16 %v479, %v477
    %v504 = vpack.c.b16 %v482, %v480
    %v505 = vpack.c.b16 %v483, %v481
    %v506 = vpack.c.b16 %v486, %v484
    %v507 = vpack.c.b16 %v487, %v485
    %v508 = vpack.c.b16 %v490, %v488
    %v509 = vpack.c.b16 %v491, %v489
    %v510 = vpack.c.b16 %v494, %v492
    %v511 = vpack.c.b16 %v495, %v493
    %528 = vmatprep.subr.bf16.mxu0 %v511
    %529 = vmatpush1.bf16.msra.mxu0 %v510
    %530 = vmatprep.subr.bf16.mxu0 %v509
    %531 = vmatpush1.bf16.msra.mxu0 %v508
    %532 = vmatprep.subr.bf16.mxu0 %v507
    %533 = vmatpush1.bf16.msra.mxu0 %v506
    %534 = vmatprep.subr.bf16.mxu0 %v505
    %535 = vmatpush1.bf16.msra.mxu0 %v504
    %536 = vmatprep.subr.bf16.mxu0 %v503
    %537 = vmatpush1.bf16.msra.mxu0 %v502
    %538 = vmatprep.subr.bf16.mxu0 %v501
    %539 = vmatpush1.bf16.msra.mxu0 %v500
    %540 = vmatprep.subr.bf16.mxu0 %v499
    %541 = vmatpush1.bf16.msra.mxu0 %v498
    %542 = vmatprep.subr.bf16.mxu0 %v497
    %543 = vmatpush1.bf16.msra.mxu0 %v496
    %544 = vmatprep.subr.bf16.mxu0 0
    %545 = vmatpush2.bf16.msra.mxu0 0
    %546 = vmatprep.subr.bf16.mxu0 0
    %547 = vmatpush2.bf16.msra.mxu0 0
    %548 = vmatprep.subr.bf16.mxu0 0
    %549 = vmatpush2.bf16.msra.mxu0 0
    %550 = vmatprep.subr.bf16.mxu0 0
    %551 = vmatpush2.bf16.msra.mxu0 0
    %552 = vmatprep.subr.bf16.mxu0 0
    %553 = vmatpush2.bf16.msra.mxu0 0
    %554 = vmatprep.subr.bf16.mxu0 0
    %555 = vmatpush2.bf16.msra.mxu0 0
    %556 = vmatprep.subr.bf16.mxu0 0
    %557 = vmatpush2.bf16.msra.mxu0 0
    %558 = vmatprep.subr.bf16.mxu0 0
    %559 = vmatpush2.bf16.msra.mxu0 0
    %560 = vmatprep.mubr.bf16.mxu0 0
    %561 = vmatmul.mubr.bf16.gmra.mxu0 %v446
    %v562 = vpop.f32.mrf.mxu0
    %v563 = vadd.f32 0.0, %v562
    %v564 = vpop.f32.mrf.mxu0
    %v565 = vadd.f32 0.0, %v564
    %v566 = vpop.f32.mrf.mxu0
    %v567 = vadd.f32 0.0, %v566
    %v568 = vpop.f32.mrf.mxu0
    %v569 = vadd.f32 0.0, %v568
    %570 = vdwg.mxu0
    %v571 = vpack.c.bf16 %v567, %v563
    %v572 = vpack.c.bf16 %v569, %v565
    %v575 = vunpack.c.l.b16 %v277
    %v576 = vunpack.c.l.b16 %v278
    %v577 = vunpack.c.h.b16 %v277
    %v578 = vunpack.c.h.b16 %v278
    %v579 = vpack.c.b16 %v576, %v575
    %v580 = vpack.c.b16 %v578, %v577
    %v585 = vunpack.c.l.b16 %v424
    %v586 = vunpack.c.l.b16 %v425
    %v587 = vunpack.c.h.b16 %v424
    %v588 = vunpack.c.h.b16 %v425
    %v589 = vpack.c.b16 %v586, %v585
    %v590 = vpack.c.b16 %v588, %v587
    %v595 = vunpack.c.l.b16 %v571
    %v596 = vunpack.c.l.b16 %v572
    %v597 = vunpack.c.h.b16 %v571
    %v598 = vunpack.c.h.b16 %v572
    %v599 = vpack.c.b16 %v596, %v595
    %v600 = vpack.c.b16 %v598, %v597
    %601 = vmatprep.subr.bf16.mxu0 0
    %602 = vmatpush1.bf16.xpose.msra.mxu0 0
    %603 = vmatprep.subr.bf16.mxu0 0
    %604 = vmatpush1.bf16.xpose.msra.mxu0 0
    %605 = vmatprep.subr.bf16.mxu0 0
    %606 = vmatpush1.bf16.xpose.msra.mxu0 0
    %607 = vmatprep.subr.bf16.mxu0 0
    %608 = vmatpush1.bf16.xpose.msra.mxu0 0
    %609 = vmatprep.subr.bf16.mxu0 0
    %610 = vmatpush1.bf16.xpose.msra.mxu0 0
    %611 = vmatprep.subr.bf16.mxu0 0
    %612 = vmatpush1.bf16.xpose.msra.mxu0 0
    %613 = vmatprep.subr.bf16.mxu0 0
    %614 = vmatpush1.bf16.xpose.msra.mxu0 0
    %615 = vmatprep.subr.bf16.mxu0 0
    %616 = vmatpush1.bf16.xpose.msra.mxu0 %v589
    %617 = vmatprep.subr.bf16.mxu0 0
    %618 = vmatpush2.bf16.xpose.msra.mxu0 0
    %619 = vmatprep.subr.bf16.mxu0 0
    %620 = vmatpush2.bf16.xpose.msra.mxu0 0
    %621 = vmatprep.subr.bf16.mxu0 0
    %622 = vmatpush2.bf16.xpose.msra.mxu0 0
    %623 = vmatprep.subr.bf16.mxu0 0
    %624 = vmatpush2.bf16.xpose.msra.mxu0 0
    %625 = vmatprep.subr.bf16.mxu0 0
    %626 = vmatpush2.bf16.xpose.msra.mxu0 0
    %627 = vmatprep.subr.bf16.mxu0 0
    %628 = vmatpush2.bf16.xpose.msra.mxu0 0
    %629 = vmatprep.subr.bf16.mxu0 0
    %630 = vmatpush2.bf16.xpose.msra.mxu0 0
    %631 = vmatprep.subr.bf16.mxu0 0
    %632 = vmatpush2.bf16.xpose.msra.mxu0 0
    %633 = vmatprep.mubr.bf16.mxu0 0
    %634 = vmatmul.mubr.bf16.gmra.mxu0 %v579
    %v635 = vpop.f32.mrf.mxu0
    %v636 = vadd.f32 0.0, %v635
    %v637 = vpop.f32.mrf.mxu0
    %v638 = vpop.f32.mrf.mxu0
    %v639 = vpop.f32.mrf.mxu0
    %640 = vdwg.mxu0
    %641 = vmatprep.subr.bf16.mxu0 0
    %642 = vmatpush1.bf16.xpose.msra.mxu0 0
    %643 = vmatprep.subr.bf16.mxu0 0
    %644 = vmatpush1.bf16.xpose.msra.mxu0 0
    %645 = vmatprep.subr.bf16.mxu0 0
    %646 = vmatpush1.bf16.xpose.msra.mxu0 0
    %647 = vmatprep.subr.bf16.mxu0 0
    %648 = vmatpush1.bf16.xpose.msra.mxu0 0
    %649 = vmatprep.subr.bf16.mxu0 0
    %650 = vmatpush1.bf16.xpose.msra.mxu0 0
    %651 = vmatprep.subr.bf16.mxu0 0
    %652 = vmatpush1.bf16.xpose.msra.mxu0 0
    %653 = vmatprep.subr.bf16.mxu0 0
    %654 = vmatpush1.bf16.xpose.msra.mxu0 0
    %655 = vmatprep.subr.bf16.mxu0 0
    %656 = vmatpush1.bf16.xpose.msra.mxu0 %v590
    %657 = vmatprep.subr.bf16.mxu0 0
    %658 = vmatpush2.bf16.xpose.msra.mxu0 0
    %659 = vmatprep.subr.bf16.mxu0 0
    %660 = vmatpush2.bf16.xpose.msra.mxu0 0
    %661 = vmatprep.subr.bf16.mxu0 0
    %662 = vmatpush2.bf16.xpose.msra.mxu0 0
    %663 = vmatprep.subr.bf16.mxu0 0
    %664 = vmatpush2.bf16.xpose.msra.mxu0 0
    %665 = vmatprep.subr.bf16.mxu0 0
    %666 = vmatpush2.bf16.xpose.msra.mxu0 0
    %667 = vmatprep.subr.bf16.mxu0 0
    %668 = vmatpush2.bf16.xpose.msra.mxu0 0
    %669 = vmatprep.subr.bf16.mxu0 0
    %670 = vmatpush2.bf16.xpose.msra.mxu0 0
    %671 = vmatprep.subr.bf16.mxu0 0
    %672 = vmatpush2.bf16.xpose.msra.mxu0 0
    %673 = vmatprep.mubr.bf16.mxu0 0
    %674 = vmatmul.mubr.bf16.gmra.mxu0 %v580
    %v675 = vpop.f32.mrf.mxu0
    %v676 = vadd.f32 0.0, %v675
    %v677 = vpop.f32.mrf.mxu0
    %v678 = vpop.f32.mrf.mxu0
    %v679 = vpop.f32.mrf.mxu0
    %680 = vdwg.mxu0
    %vm681 = vcmask 64512
    %v682 = vsel %vm681, %v636, -inf
    %683 = vmax.xlane.f32.xlu0 %v682
    %v684 = vpop.xlane.xlu0 %683
    %v685 = vsel %vm681, %v676, -inf
    %686 = vmax.xlane.f32.xlu0 %v685
    %v687 = vpop.xlane.xlu0 %686
    %v688 = vsub.f32 %v636, %v684
    %v689 = vsub.f32 %v676, %v687
    %v690 = vmul.f32 %v688, 1.442695
    %v691 = vpow.pop %v690
    %v692 = vmul.f32 %v689, 1.442695
    %v693 = vpow.pop %v692
    %v694 = vsel %vm681, %v691, 0.0
    %695 = vadd.xlane.f32.xlu0 %v694
    %v696 = vpop.xlane.xlu0 %695
    %v697 = vsel %vm681, %v693, 0.0
    %698 = vadd.xlane.f32.xlu0 %v697
    %v699 = vpop.xlane.xlu0 %698
    %v700 = vrcp.pop %v696
    %v701 = vrcp.pop %v699
    %v702 = vmul.f32 %v691, %v700
    %v703 = vmul.f32 %v693, %v701
    %v704 = vpack.c.bf16 %v702, %v702
    %v705 = vpack.c.bf16 %v703, %v703
    %v707 = vsel %vm681, %v704, 0
    %vm709 = vcmask 1043456
    %v711 = vsel %vm709, %v599, 0
    %713 = vmatprep.subr.bf16.mxu0 0
    %714 = vmatpush1.bf16.msra.mxu0 0
    %715 = vmatprep.subr.bf16.mxu0 0
    %716 = vmatpush1.bf16.msra.mxu0 0
    %717 = vmatprep.subr.bf16.mxu0 0
    %718 = vmatpush1.bf16.msra.mxu0 0
    %719 = vmatprep.subr.bf16.mxu0 0
    %720 = vmatpush1.bf16.msra.mxu0 0
    %721 = vmatprep.subr.bf16.mxu0 0
    %722 = vmatpush1.bf16.msra.mxu0 0
    %723 = vmatprep.subr.bf16.mxu0 0
    %724 = vmatpush1.bf16.msra.mxu0 0
    %725 = vmatprep.subr.bf16.mxu0 0
    %726 = vmatpush1.bf16.msra.mxu0 0
    %727 = vmatprep.subr.bf16.mxu0 0
    %728 = vmatpush1.bf16.msra.mxu0 %v711
    %729 = vmatprep.subr.bf16.mxu0 0
    %730 = vmatpush2.bf16.msra.mxu0 0
    %731 = vmatprep.subr.bf16.mxu0 0
    %732 = vmatpush2.bf16.msra.mxu0 0
    %733 = vmatprep.subr.bf16.mxu0 0
    %734 = vmatpush2.bf16.msra.mxu0 0
    %735 = vmatprep.subr.bf16.mxu0 0
    %736 = vmatpush2.bf16.msra.mxu0 0
    %737 = vmatprep.subr.bf16.mxu0 0
    %738 = vmatpush2.bf16.msra.mxu0 0
    %739 = vmatprep.subr.bf16.mxu0 0
    %740 = vmatpush2.bf16.msra.mxu0 0
    %741 = vmatprep.subr.bf16.mxu0 0
    %742 = vmatpush2.bf16.msra.mxu0 0
    %743 = vmatprep.subr.bf16.mxu0 0
    %744 = vmatpush2.bf16.msra.mxu0 0
    %745 = vmatprep.mubr.bf16.mxu0 0
    %746 = vmatmul.mubr.bf16.gmra.mxu0 %v707
    %v747 = vpop.f32.mrf.mxu0
    %v748 = vadd.f32 0.0, %v747
    %v749 = vpop.f32.mrf.mxu0
    %v750 = vpop.f32.mrf.mxu0
    %v751 = vpop.f32.mrf.mxu0
    %752 = vdwg.mxu0
    %v754 = vsel %vm681, %v705, 0
    %v757 = vsel %vm709, %v600, 0
    %759 = vmatprep.subr.bf16.mxu0 0
    %760 = vmatpush1.bf16.msra.mxu0 0
    %761 = vmatprep.subr.bf16.mxu0 0
    %762 = vmatpush1.bf16.msra.mxu0 0
    %763 = vmatprep.subr.bf16.mxu0 0
    %764 = vmatpush1.bf16.msra.mxu0 0
    %765 = vmatprep.subr.bf16.mxu0 0
    %766 = vmatpush1.bf16.msra.mxu0 0
    %767 = vmatprep.subr.bf16.mxu0 0
    %768 = vmatpush1.bf16.msra.mxu0 0
    %769 = vmatprep.subr.bf16.mxu0 0
    %770 = vmatpush1.bf16.msra.mxu0 0
    %771 = vmatprep.subr.bf16.mxu0 0
    %772 = vmatpush1.bf16.msra.mxu0 0
    %773 = vmatprep.subr.bf16.mxu0 0
    %774 = vmatpush1.bf16.msra.mxu0 %v757
    %775 = vmatprep.subr.bf16.mxu0 0
    %776 = vmatpush2.bf16.msra.mxu0 0
    %777 = vmatprep.subr.bf16.mxu0 0
    %778 = vmatpush2.bf16.msra.mxu0 0
    %779 = vmatprep.subr.bf16.mxu0 0
    %780 = vmatpush2.bf16.msra.mxu0 0
    %781 = vmatprep.subr.bf16.mxu0 0
    %782 = vmatpush2.bf16.msra.mxu0 0
    %783 = vmatprep.subr.bf16.mxu0 0
    %784 = vmatpush2.bf16.msra.mxu0 0
    %785 = vmatprep.subr.bf16.mxu0 0
    %786 = vmatpush2.bf16.msra.mxu0 0
    %787 = vmatprep.subr.bf16.mxu0 0
    %788 = vmatpush2.bf16.msra.mxu0 0
    %789 = vmatprep.subr.bf16.mxu0 0
    %790 = vmatpush2.bf16.msra.mxu0 0
    %791 = vmatprep.mubr.bf16.mxu0 0
    %792 = vmatmul.mubr.bf16.gmra.mxu0 %v754
    %v793 = vpop.f32.mrf.mxu0
    %v794 = vadd.f32 0.0, %v793
    %v795 = vpop.f32.mrf.mxu0
    %v796 = vpop.f32.mrf.mxu0
    %v797 = vpop.f32.mrf.mxu0
    %798 = vdwg.mxu0
    %v799 = vpack.c.bf16 %v794, %v748
    %v800 = vld [vmem:[#allocation13] sm:$0xf]
    %v801 = vld [vmem:[#allocation13 + $0x4] sm:$0xf]
    %v802 = vld [vmem:[#allocation13 + $0x8] sm:$0xf]
    %v803 = vld [vmem:[#allocation13 + $0xc] sm:$0xf]
    %v804 = vld [vmem:[#allocation13 + $0x10] sm:$0xf]
    %v805 = vld [vmem:[#allocation13 + $0x14] sm:$0xf]
    %v806 = vld [vmem:[#allocation13 + $0x18] sm:$0xf]
    %v807 = vld [vmem:[#allocation13 + $0x1c] sm:$0xf]
    %v808 = vld [vmem:[#allocation13 + $0x20] sm:$0xf]
    %v809 = vld [vmem:[#allocation13 + $0x24] sm:$0xf]
    %v810 = vld [vmem:[#allocation13 + $0x28] sm:$0xf]
    %v811 = vld [vmem:[#allocation13 + $0x2c] sm:$0xf]
    %v812 = vld [vmem:[#allocation13 + $0x30] sm:$0xf]
    %v813 = vld [vmem:[#allocation13 + $0x34] sm:$0xf]
    %v814 = vld [vmem:[#allocation13 + $0x38] sm:$0xf]
    %v815 = vld [vmem:[#allocation13 + $0x3c] sm:$0xf]
    %v816 = vrot.slane %v579, 4
    %v818 = vrot.slane %v589, 4
    %820 = vmatprep.subr.bf16.mxu0 0
    %821 = vmatpush1.bf16.xpose.msra.mxu0 0
    %822 = vmatprep.subr.bf16.mxu0 0
    %823 = vmatpush1.bf16.xpose.msra.mxu0 0
    %824 = vmatprep.subr.bf16.mxu0 0
    %825 = vmatpush1.bf16.xpose.msra.mxu0 0
    %826 = vmatprep.subr.bf16.mxu0 0
    %827 = vmatpush1.bf16.xpose.msra.mxu0 0
    %828 = vmatprep.subr.bf16.mxu0 0
    %829 = vmatpush1.bf16.xpose.msra.mxu0 0
    %830 = vmatprep.subr.bf16.mxu0 0
    %831 = vmatpush1.bf16.xpose.msra.mxu0 0
    %832 = vmatprep.subr.bf16.mxu0 0
    %833 = vmatpush1.bf16.xpose.msra.mxu0 0
    %834 = vmatprep.subr.bf16.mxu0 0
    %835 = vmatpush1.bf16.xpose.msra.mxu0 %v818
    %836 = vmatprep.subr.bf16.mxu0 0
    %837 = vmatpush2.bf16.xpose.msra.mxu0 0
    %838 = vmatprep.subr.bf16.mxu0 0
    %839 = vmatpush2.bf16.xpose.msra.mxu0 0
    %840 = vmatprep.subr.bf16.mxu0 0
    %841 = vmatpush2.bf16.xpose.msra.mxu0 0
    %842 = vmatprep.subr.bf16.mxu0 0
    %843 = vmatpush2.bf16.xpose.msra.mxu0 0
    %844 = vmatprep.subr.bf16.mxu0 0
    %845 = vmatpush2.bf16.xpose.msra.mxu0 0
    %846 = vmatprep.subr.bf16.mxu0 0
    %847 = vmatpush2.bf16.xpose.msra.mxu0 0
    %848 = vmatprep.subr.bf16.mxu0 0
    %849 = vmatpush2.bf16.xpose.msra.mxu0 0
    %850 = vmatprep.subr.bf16.mxu0 0
    %851 = vmatpush2.bf16.xpose.msra.mxu0 0
    %852 = vmatprep.mubr.bf16.mxu0 0
    %853 = vmatmul.mubr.bf16.gmra.mxu0 %v816
    %v854 = vpop.f32.mrf.mxu0
    %v855 = vadd.f32 0.0, %v854
    %v856 = vpop.f32.mrf.mxu0
    %v857 = vpop.f32.mrf.mxu0
    %v858 = vpop.f32.mrf.mxu0
    %859 = vdwg.mxu0
    %v860 = vrot.slane %v580, 4
    %v862 = vrot.slane %v590, 4
    %864 = vmatprep.subr.bf16.mxu0 0
    %865 = vmatpush1.bf16.xpose.msra.mxu0 0
    %866 = vmatprep.subr.bf16.mxu0 0
    %867 = vmatpush1.bf16.xpose.msra.mxu0 0
    %868 = vmatprep.subr.bf16.mxu0 0
    %869 = vmatpush1.bf16.xpose.msra.mxu0 0
    %870 = vmatprep.subr.bf16.mxu0 0
    %871 = vmatpush1.bf16.xpose.msra.mxu0 0
    %872 = vmatprep.subr.bf16.mxu0 0
    %873 = vmatpush1.bf16.xpose.msra.mxu0 0
    %874 = vmatprep.subr.bf16.mxu0 0
    %875 = vmatpush1.bf16.xpose.msra.mxu0 0
    %876 = vmatprep.subr.bf16.mxu0 0
    %877 = vmatpush1.bf16.xpose.msra.mxu0 0
    %878 = vmatprep.subr.bf16.mxu0 0
    %879 = vmatpush1.bf16.xpose.msra.mxu0 %v862
    %880 = vmatprep.subr.bf16.mxu0 0
    %881 = vmatpush2.bf16.xpose.msra.mxu0 0
    %882 = vmatprep.subr.bf16.mxu0 0
    %883 = vmatpush2.bf16.xpose.msra.mxu0 0
    %884 = vmatprep.subr.bf16.mxu0 0
    %885 = vmatpush2.bf16.xpose.msra.mxu0 0
    %886 = vmatprep.subr.bf16.mxu0 0
    %887 = vmatpush2.bf16.xpose.msra.mxu0 0
    %888 = vmatprep.subr.bf16.mxu0 0
    %889 = vmatpush2.bf16.xpose.msra.mxu0 0
    %890 = vmatprep.subr.bf16.mxu0 0
    %891 = vmatpush2.bf16.xpose.msra.mxu0 0
    %892 = vmatprep.subr.bf16.mxu0 0
    %893 = vmatpush2.bf16.xpose.msra.mxu0 0
    %894 = vmatprep.subr.bf16.mxu0 0
    %895 = vmatpush2.bf16.xpose.msra.mxu0 0
    %896 = vmatprep.mubr.bf16.mxu0 0
    %897 = vmatmul.mubr.bf16.gmra.mxu0 %v860
    %v898 = vpop.f32.mrf.mxu0
    %v899 = vadd.f32 0.0, %v898
    %v900 = vpop.f32.mrf.mxu0
    %v901 = vpop.f32.mrf.mxu0
    %v902 = vpop.f32.mrf.mxu0
    %903 = vdwg.mxu0
    %v904 = vsel %vm681, %v855, -inf
    %905 = vmax.xlane.f32.xlu0 %v904
    %v906 = vpop.xlane.xlu0 %905
    %v907 = vsel %vm681, %v899, -inf
    %908 = vmax.xlane.f32.xlu0 %v907
    %v909 = vpop.xlane.xlu0 %908
    %v910 = vsub.f32 %v855, %v906
    %v911 = vsub.f32 %v899, %v909
    %v912 = vmul.f32 %v910, 1.442695
    %v913 = vpow.pop %v912
    %v914 = vmul.f32 %v911, 1.442695
    %v915 = vpow.pop %v914
    %v916 = vsel %vm681, %v913, 0.0
    %917 = vadd.xlane.f32.xlu0 %v916
    %v918 = vpop.xlane.xlu0 %917
    %v919 = vsel %vm681, %v915, 0.0
    %920 = vadd.xlane.f32.xlu0 %v919
    %v921 = vpop.xlane.xlu0 %920
    %v922 = vrcp.pop %v918
    %v923 = vrcp.pop %v921
    %v924 = vmul.f32 %v913, %v922
    %v925 = vmul.f32 %v915, %v923
    %v926 = vpack.c.bf16 %v924, %v924
    %v927 = vpack.c.bf16 %v925, %v925
    %v928 = vrot.slane %v599, 4
    %v930 = vsel %vm681, %v926, 0
    %v933 = vsel %vm709, %v928, 0
    %935 = vmatprep.subr.bf16.mxu0 0
    %936 = vmatpush1.bf16.msra.mxu0 0
    %937 = vmatprep.subr.bf16.mxu0 0
    %938 = vmatpush1.bf16.msra.mxu0 0
    %939 = vmatprep.subr.bf16.mxu0 0
    %940 = vmatpush1.bf16.msra.mxu0 0
    %941 = vmatprep.subr.bf16.mxu0 0
    %942 = vmatpush1.bf16.msra.mxu0 0
    %943 = vmatprep.subr.bf16.mxu0 0
    %944 = vmatpush1.bf16.msra.mxu0 0
    %945 = vmatprep.subr.bf16.mxu0 0
    %946 = vmatpush1.bf16.msra.mxu0 0
    %947 = vmatprep.subr.bf16.mxu0 0
    %948 = vmatpush1.bf16.msra.mxu0 0
    %949 = vmatprep.subr.bf16.mxu0 0
    %950 = vmatpush1.bf16.msra.mxu0 %v933
    %951 = vmatprep.subr.bf16.mxu0 0
    %952 = vmatpush2.bf16.msra.mxu0 0
    %953 = vmatprep.subr.bf16.mxu0 0
    %954 = vmatpush2.bf16.msra.mxu0 0
    %955 = vmatprep.subr.bf16.mxu0 0
    %956 = vmatpush2.bf16.msra.mxu0 0
    %957 = vmatprep.subr.bf16.mxu0 0
    %958 = vmatpush2.bf16.msra.mxu0 0
    %959 = vmatprep.subr.bf16.mxu0 0
    %960 = vmatpush2.bf16.msra.mxu0 0
    %961 = vmatprep.subr.bf16.mxu0 0
    %962 = vmatpush2.bf16.msra.mxu0 0
    %963 = vmatprep.subr.bf16.mxu0 0
    %964 = vmatpush2.bf16.msra.mxu0 0
    %965 = vmatprep.subr.bf16.mxu0 0
    %966 = vmatpush2.bf16.msra.mxu0 0
    %967 = vmatprep.mubr.bf16.mxu0 0
    %968 = vmatmul.mubr.bf16.gmra.mxu0 %v930
    %v969 = vpop.f32.mrf.mxu0
    %v970 = vadd.f32 0.0, %v969
    %v971 = vpop.f32.mrf.mxu0
    %v972 = vpop.f32.mrf.mxu0
    %v973 = vpop.f32.mrf.mxu0
    %974 = vdwg.mxu0
    %v975 = vrot.slane %v600, 4
    %v977 = vsel %vm681, %v927, 0
    %v980 = vsel %vm709, %v975, 0
    %982 = vmatprep.subr.bf16.mxu0 0
    %983 = vmatpush1.bf16.msra.mxu0 0
    %984 = vmatprep.subr.bf16.mxu0 0
    %985 = vmatpush1.bf16.msra.mxu0 0
    %986 = vmatprep.subr.bf16.mxu0 0
    %987 = vmatpush1.bf16.msra.mxu0 0
    %988 = vmatprep.subr.bf16.mxu0 0
    %989 = vmatpush1.bf16.msra.mxu0 0
    %990 = vmatprep.subr.bf16.mxu0 0
    %991 = vmatpush1.bf16.msra.mxu0 0
    %992 = vmatprep.subr.bf16.mxu0 0
    %993 = vmatpush1.bf16.msra.mxu0 0
    %994 = vmatprep.subr.bf16.mxu0 0
    %995 = vmatpush1.bf16.msra.mxu0 0
    %996 = vmatprep.subr.bf16.mxu0 0
    %997 = vmatpush1.bf16.msra.mxu0 %v980
    %998 = vmatprep.subr.bf16.mxu0 0
    %999 = vmatpush2.bf16.msra.mxu0 0
    %1000 = vmatprep.subr.bf16.mxu0 0
    %1001 = vmatpush2.bf16.msra.mxu0 0
    %1002 = vmatprep.subr.bf16.mxu0 0
    %1003 = vmatpush2.bf16.msra.mxu0 0
    %1004 = vmatprep.subr.bf16.mxu0 0
    %1005 = vmatpush2.bf16.msra.mxu0 0
    %1006 = vmatprep.subr.bf16.mxu0 0
    %1007 = vmatpush2.bf16.msra.mxu0 0
    %1008 = vmatprep.subr.bf16.mxu0 0
    %1009 = vmatpush2.bf16.msra.mxu0 0
    %1010 = vmatprep.subr.bf16.mxu0 0
    %1011 = vmatpush2.bf16.msra.mxu0 0
    %1012 = vmatprep.subr.bf16.mxu0 0
    %1013 = vmatpush2.bf16.msra.mxu0 0
    %1014 = vmatprep.mubr.bf16.mxu0 0
    %1015 = vmatmul.mubr.bf16.gmra.mxu0 %v977
    %v1016 = vpop.f32.mrf.mxu0
    %v1017 = vadd.f32 0.0, %v1016
    %v1018 = vpop.f32.mrf.mxu0
    %v1019 = vpop.f32.mrf.mxu0
    %v1020 = vpop.f32.mrf.mxu0
    %1021 = vdwg.mxu0
    %v1022 = vpack.c.bf16 %v1017, %v970
    %v1023 = vld [vmem:[#allocation13 + $0x40] sm:$0xf]
    %v1024 = vld [vmem:[#allocation13 + $0x44] sm:$0xf]
    %v1025 = vld [vmem:[#allocation13 + $0x48] sm:$0xf]
    %v1026 = vld [vmem:[#allocation13 + $0x4c] sm:$0xf]
    %v1027 = vld [vmem:[#allocation13 + $0x50] sm:$0xf]
    %v1028 = vld [vmem:[#allocation13 + $0x54] sm:$0xf]
    %v1029 = vld [vmem:[#allocation13 + $0x58] sm:$0xf]
    %v1030 = vld [vmem:[#allocation13 + $0x5c] sm:$0xf]
    %v1031 = vld [vmem:[#allocation13 + $0x60] sm:$0xf]
    %v1032 = vld [vmem:[#allocation13 + $0x64] sm:$0xf]
    %v1033 = vld [vmem:[#allocation13 + $0x68] sm:$0xf]
    %v1034 = vld [vmem:[#allocation13 + $0x6c] sm:$0xf]
    %v1035 = vld [vmem:[#allocation13 + $0x70] sm:$0xf]
    %v1036 = vld [vmem:[#allocation13 + $0x74] sm:$0xf]
    %v1037 = vld [vmem:[#allocation13 + $0x78] sm:$0xf]
    %v1038 = vld [vmem:[#allocation13 + $0x7c] sm:$0xf]
    %v1055 = vunpack.c.l.b16 %v1023
    %v1056 = vunpack.c.l.b16 %v1024
    %v1057 = vunpack.c.l.b16 %v1025
    %v1058 = vunpack.c.l.b16 %v1026
    %v1059 = vunpack.c.l.b16 %v1027
    %v1060 = vunpack.c.l.b16 %v1028
    %v1061 = vunpack.c.l.b16 %v1029
    %v1062 = vunpack.c.l.b16 %v1030
    %v1063 = vunpack.c.l.b16 %v1031
    %v1064 = vunpack.c.l.b16 %v1032
    %v1065 = vunpack.c.l.b16 %v1033
    %v1066 = vunpack.c.l.b16 %v1034
    %v1067 = vunpack.c.l.b16 %v1035
    %v1068 = vunpack.c.l.b16 %v1036
    %v1069 = vunpack.c.l.b16 %v1037
    %v1070 = vunpack.c.l.b16 %v1038
    %v1071 = vpack.c.b16 %v1056, %v1055
    %v1072 = vpack.c.b16 %v1058, %v1057
    %v1073 = vpack.c.b16 %v1060, %v1059
    %v1074 = vpack.c.b16 %v1062, %v1061
    %v1075 = vpack.c.b16 %v1064, %v1063
    %v1076 = vpack.c.b16 %v1066, %v1065
    %v1077 = vpack.c.b16 %v1068, %v1067
    %v1078 = vpack.c.b16 %v1070, %v1069
    %1087 = vmatprep.subr.bf16.mxu0 0
    %1088 = vmatpush1.bf16.msra.mxu0 %v1078
    %1089 = vmatprep.subr.bf16.mxu0 0
    %1090 = vmatpush1.bf16.msra.mxu0 %v1077
    %1091 = vmatprep.subr.bf16.mxu0 0
    %1092 = vmatpush1.bf16.msra.mxu0 %v1076
    %1093 = vmatprep.subr.bf16.mxu0 0
    %1094 = vmatpush1.bf16.msra.mxu0 %v1075
    %1095 = vmatprep.subr.bf16.mxu0 0
    %1096 = vmatpush1.bf16.msra.mxu0 %v1074
    %1097 = vmatprep.subr.bf16.mxu0 0
    %1098 = vmatpush1.bf16.msra.mxu0 %v1073
    %1099 = vmatprep.subr.bf16.mxu0 0
    %1100 = vmatpush1.bf16.msra.mxu0 %v1072
    %1101 = vmatprep.subr.bf16.mxu0 0
    %1102 = vmatpush1.bf16.msra.mxu0 %v1071
    %1103 = vmatprep.subr.bf16.mxu0 0
    %1104 = vmatpush2.bf16.msra.mxu0 0
    %1105 = vmatprep.subr.bf16.mxu0 0
    %1106 = vmatpush2.bf16.msra.mxu0 0
    %1107 = vmatprep.subr.bf16.mxu0 0
    %1108 = vmatpush2.bf16.msra.mxu0 0
    %1109 = vmatprep.subr.bf16.mxu0 0
    %1110 = vmatpush2.bf16.msra.mxu0 0
    %1111 = vmatprep.subr.bf16.mxu0 0
    %1112 = vmatpush2.bf16.msra.mxu0 0
    %1113 = vmatprep.subr.bf16.mxu0 0
    %1114 = vmatpush2.bf16.msra.mxu0 0
    %1115 = vmatprep.subr.bf16.mxu0 0
    %1116 = vmatpush2.bf16.msra.mxu0 0
    %1117 = vmatprep.subr.bf16.mxu0 0
    %1118 = vmatpush2.bf16.msra.mxu0 0
    %1119 = vmatprep.mubr.bf16.mxu0 0
    %1120 = vmatmul.mubr.bf16.gmra.mxu0 %v1022
    %v1121 = vpop.f32.mrf.mxu0
    %v1122 = vadd.f32 0.0, %v1121
    %v1123 = vpop.f32.mrf.mxu0
    %v1124 = vpop.f32.mrf.mxu0
    %v1125 = vadd.f32 0.0, %v1124
    %v1126 = vpop.f32.mrf.mxu0
    %1127 = vdwg.mxu0
    %v1144 = vunpack.c.l.b16 %v800
    %v1145 = vunpack.c.l.b16 %v801
    %v1146 = vunpack.c.l.b16 %v802
    %v1147 = vunpack.c.l.b16 %v803
    %v1148 = vunpack.c.l.b16 %v804
    %v1149 = vunpack.c.l.b16 %v805
    %v1150 = vunpack.c.l.b16 %v806
    %v1151 = vunpack.c.l.b16 %v807
    %v1152 = vunpack.c.l.b16 %v808
    %v1153 = vunpack.c.l.b16 %v809
    %v1154 = vunpack.c.l.b16 %v810
    %v1155 = vunpack.c.l.b16 %v811
    %v1156 = vunpack.c.l.b16 %v812
    %v1157 = vunpack.c.l.b16 %v813
    %v1158 = vunpack.c.l.b16 %v814
    %v1159 = vunpack.c.l.b16 %v815
    %v1160 = vpack.c.b16 %v1145, %v1144
    %v1161 = vpack.c.b16 %v1147, %v1146
    %v1162 = vpack.c.b16 %v1149, %v1148
    %v1163 = vpack.c.b16 %v1151, %v1150
    %v1164 = vpack.c.b16 %v1153, %v1152
    %v1165 = vpack.c.b16 %v1155, %v1154
    %v1166 = vpack.c.b16 %v1157, %v1156
    %v1167 = vpack.c.b16 %v1159, %v1158
    %1176 = vmatprep.subr.bf16.mxu0 0
    %1177 = vmatpush1.bf16.msra.mxu0 %v1167
    %1178 = vmatprep.subr.bf16.mxu0 0
    %1179 = vmatpush1.bf16.msra.mxu0 %v1166
    %1180 = vmatprep.subr.bf16.mxu0 0
    %1181 = vmatpush1.bf16.msra.mxu0 %v1165
    %1182 = vmatprep.subr.bf16.mxu0 0
    %1183 = vmatpush1.bf16.msra.mxu0 %v1164
    %1184 = vmatprep.subr.bf16.mxu0 0
    %1185 = vmatpush1.bf16.msra.mxu0 %v1163
    %1186 = vmatprep.subr.bf16.mxu0 0
    %1187 = vmatpush1.bf16.msra.mxu0 %v1162
    %1188 = vmatprep.subr.bf16.mxu0 0
    %1189 = vmatpush1.bf16.msra.mxu0 %v1161
    %1190 = vmatprep.subr.bf16.mxu0 0
    %1191 = vmatpush1.bf16.msra.mxu0 %v1160
    %1192 = vmatprep.subr.bf16.mxu0 0
    %1193 = vmatpush2.bf16.msra.mxu0 0
    %1194 = vmatprep.subr.bf16.mxu0 0
    %1195 = vmatpush2.bf16.msra.mxu0 0
    %1196 = vmatprep.subr.bf16.mxu0 0
    %1197 = vmatpush2.bf16.msra.mxu0 0
    %1198 = vmatprep.subr.bf16.mxu0 0
    %1199 = vmatpush2.bf16.msra.mxu0 0
    %1200 = vmatprep.subr.bf16.mxu0 0
    %1201 = vmatpush2.bf16.msra.mxu0 0
    %1202 = vmatprep.subr.bf16.mxu0 0
    %1203 = vmatpush2.bf16.msra.mxu0 0
    %1204 = vmatprep.subr.bf16.mxu0 0
    %1205 = vmatpush2.bf16.msra.mxu0 0
    %1206 = vmatprep.subr.bf16.mxu0 0
    %1207 = vmatpush2.bf16.msra.mxu0 0
    %1208 = vmatprep.mubr.bf16.mxu0 0
    %1209 = vmatmul.mubr.bf16.gmra.mxu0 %v799
    %v1210 = vpop.f32.mrf.mxu0
    %v1211 = vadd.f32 %v1122, %v1210
    %v1212 = vpop.f32.mrf.mxu0
    %v1213 = vpop.f32.mrf.mxu0
    %v1214 = vadd.f32 %v1125, %v1213
    %v1215 = vpop.f32.mrf.mxu0
    %1216 = vdwg.mxu0
    %v1217 = vld [vmem:[%s7] sm:$0x1]
    %v1219 = vlaneseq
    %v1220 = vshrl.u32 %v1219, 7
    %v1221 = vsub.s32 0, %v1220
    %v1222 = vrot.slane %v1217, %v1221
    %v1224 = vadd.f32 %v1211, %v1222
    %v1225 = vadd.f32 %v1214, %v1222
    %1226 = vst [vmem:[#allocation14] sm:$0xff] %v1224
    %1227 = vst [vmem:[#allocation14 + $0x8] sm:$0xff] %v1225
    // Predicated region
    $region62: #{tpu_custom_call.1} parent=1 // pred_check
      _
    $region63: #{tpu_custom_call.1} parent=1 // pred_check_branch
      %1229 = sbr.rel (0) target = $region65
    $region64: #{tpu_custom_call.1} parent=1 // pred_region
      %s1231 = ssub.s32 256, 256
      %1232 = vsyncadd [#allocation4], %s1231
      %s1233 = sshll.u32 [#allocation14], 4
      %s1234 = int_to_ptr.vmem [resolvable:$true] %s1233
      %1239 = dma.vmem_to_hbm [thread:$0]  %s1234, 256, %s8, [#allocation4], 128, 128, 8
    $region65: #{tpu_custom_call.1} parent=1 // pred_fallthru
      _
    // Predicated region
    $region66: #{tpu_custom_call.1} parent=1 // pred_check
      _
    $region67: #{tpu_custom_call.1} parent=1 // pred_check_branch
      %1241 = sbr.rel (0) target = $region69
    $region68: #{tpu_custom_call.1} parent=1 // pred_region
      %1242 = dma.done [#allocation4], 256
    $region69: #{tpu_custom_call.1} parent=1 // pred_fallthru
      _
    %1243 = vsyncpa [#allocation3], 1
    %1244 = vsyncpa [#allocation6], 1
    %1245 = vsyncpa [#allocation9], 1
    %1246 = vsyncpa [#allocation12], 1
    %1247 = vsyncpa [#allocation4], 1

</llo_original>
